<compile_context>
chip_gen: v7x
topology: tpu7x:2x2x1
jax: 0.10.0
libtpu: 0.0.40
codegen_flags: <defaults>
</compile_context>

<pallas_src>
import math

import jax
import jax.numpy as jnp
from jax.experimental import pallas as pl
from jax.experimental.pallas import tpu as pltpu


TOK_TILE_MAX = 8192        # max tokens gathered per grid step (sweepable 4k-16k)
MIN_GRID_STEPS = 4         # keep a few steps for v7x 2-TC sharding / pipelining
MAX_GROUPS = 16            # cap on tokens packed per lane-dense output row
VMEM_LIMIT_CAP = 56 * 1024 * 1024   # stay under v7x's 64 MiB per-TC VMEM


def _round_up(x, m):
    return (x + m - 1) // m * m


def _lane_groups(emsize, max_groups=MAX_GROUPS):
    """Tokens packed per output row so the output lane width is 128-dense."""
    if emsize >= 128:
        return 1
    g = 128 // math.gcd(128, emsize)
    # TODO(synk): g > max_groups (tiny / odd emsize) falls back to a narrow,
    #             masked-store output path -- correct but slower.
    return g if g <= max_groups else 1


def _choose_tile(n_tok, unit, tok_tile_max, min_steps):
    """Largest tile <= tok_tile_max (multiple of `unit`), keeping >= min_steps
    grid steps whenever the workload is big enough to split."""
    tile = _round_up(min(tok_tile_max, max(n_tok, 1)), unit)
    if n_tok >= min_steps * unit:
        per_step = -(-n_tok // min_steps)          # ceil-div
        tile = min(tile, _round_up(per_step, unit))
    return max(tile, unit)


def _vmem_estimate_bytes(rows, g, vocab, emsize, w_bytes_per_el):
    """Rough per-step VMEM footprint (double-buffered ids/out + table + temps)."""
    lane = 128
    ids_blk = rows * lane * 4                                   # (rows, g) lane-padded
    out_blk = rows * _round_up(max(g * emsize, 1), lane) * 4
    w_blk = _round_up(vocab, 8) * _round_up(emsize, lane) * w_bytes_per_el
    onehot = rows * _round_up(vocab, lane) * 4                  # transient operands
    return 2 * (ids_blk + out_blk + w_blk) + 2 * onehot


def _embed_gather_kernel(ids_ref, w_ref, out_ref):
    """Gather one tile of token embeddings via G one-hot MXU matmuls.

    ids_ref : VMEM (rows, G)    int32   G token ids per lane-dense output row
    w_ref   : VMEM (V, E)               original (un-replicated) table
    out_ref : VMEM (rows, G*E)          lane-dense output slab
    """
    rows, g = ids_ref.shape
    v, _ = w_ref.shape

    ids = ids_ref[...]                                           # (rows, G)
    w = w_ref[...]                                               # (V, E)
    lane_v = jax.lax.broadcasted_iota(jnp.int32, (rows, v), 1)   # (rows, V)

    pieces = []
    for gg in range(g):                                          # G is small & static
        onehot = (lane_v == ids[:, gg:gg + 1]).astype(w.dtype)   # (rows, V)
        pieces.append(
            jnp.dot(onehot, w, preferred_element_type=jnp.float32)
        )                                                        # (rows, E)

    out_ref[...] = jnp.concatenate(pieces, axis=-1).astype(out_ref.dtype)


def embedding_forward(ids, weight, *, tok_tile_max=TOK_TILE_MAX):
    """Pallas equivalent of EmbeddingLayer.forward (eval path).

    ids    : (batch, seq) int32
    weight : (vocab, emsize) float32 (bf16 also supported)
    returns: (batch, seq, emsize) weight.dtype
    """
    batch, seq = ids.shape
    vocab, emsize = weight.shape
    n_tok = batch * seq

    g = _lane_groups(emsize)              # tokens packed per lane-dense output row
    unit = 8 * g                          # keeps the block's sublane dim % 8 == 0

    tile = _choose_tile(n_tok, unit, tok_tile_max, MIN_GRID_STEPS)
    n_pad = _round_up(n_tok, tile)
    rows = tile // g                      # output rows per grid step
    n_steps = n_pad // tile

    ids_flat = ids.reshape(n_tok).astype(jnp.int32)
    if n_pad != n_tok:
        ids_flat = jnp.pad(ids_flat, (0, n_pad - n_tok))   # pad tokens gather row 0
    ids2d = ids_flat.reshape(n_pad // g, g)

    vmem_est = _vmem_estimate_bytes(rows, g, vocab, emsize, weight.dtype.itemsize)
    vmem_limit = int(min(VMEM_LIMIT_CAP, max(32 * 1024 * 1024, 2 * vmem_est)))

    out_slab = pl.pallas_call(
        _embed_gather_kernel,
        out_shape=jax.ShapeDtypeStruct((n_pad // g, g * emsize), weight.dtype),
        grid=(n_steps,),
        in_specs=[
            pl.BlockSpec((rows, g), lambda i: (i, 0)),
            # whole (small, un-replicated) table; constant block index so it is
            # DMA'd once and not re-fetched across grid steps.
            pl.BlockSpec((vocab, emsize), lambda i: (0, 0)),
        ],
        out_specs=pl.BlockSpec((rows, g * emsize), lambda i: (i, 0)),
        compiler_params=pltpu.CompilerParams(
            dimension_semantics=("parallel",),
            vmem_limit_bytes=vmem_limit,
        ),
    )(ids2d, weight)

    # (n_pad//G, G*E) -> (n_pad, E) is a contiguous reshape; drop padding.
    out_flat = out_slab.reshape(n_pad, emsize)[:n_tok]
    return out_flat.reshape(batch, seq, emsize)


if __name__ == "__main__":
    # Deterministic synthetic parameters / inputs (no checkpoint loading).
    key = jax.random.PRNGKey(0)
    k_w, k_ids = jax.random.split(key)

    vocab_size = 64    # input_size
    emsize = 32        # config.emsize
    batch, seq = 2, 8

    # nn.Embedding default init: N(0, 1)
    weight = jax.random.normal(k_w, (vocab_size, emsize), dtype=jnp.float32)
    ids = jax.random.randint(k_ids, (batch, seq), 0, vocab_size, dtype=jnp.int32)

    out = embedding_forward(ids, weight)
    out = jax.block_until_ready(out)

    # Sanity check against the pure-JAX reference (weight[ids]).
    ref = weight[ids]
    assert out.shape == (batch, seq, emsize)
    assert jnp.allclose(out, ref), "mismatch vs reference embedding lookup"

    print("KERNEL_OK")
</pallas_src>

<mosaic_0001>
module attributes {stable_mosaic.version = 11 : i64} {
  func.func @_embed_gather_kernel(%arg0: i32, %arg1: memref<8x4xi32, #tpu.memory_space<vmem>>, %arg2: memref<64x32xf32, #tpu.memory_space<vmem>>, %arg3: memref<8x128xf32, #tpu.memory_space<vmem>>) attributes {dimension_semantics = [#tpu.dimension_semantics<parallel>], iteration_bounds = array<i64: 1>, scalar_prefetch = 0 : i64, scratch_operands = 0 : i64, tpu.core_type = #tpu.core_type<tc>, window_params = [{transform_indices = @transform_0, window_bounds = array<i64: 8, 4>}, {pipeline_mode = #tpu.pipeline_mode<synchronous>, transform_indices = @transform_1, window_bounds = array<i64: 64, 32>}, {transform_indices = @transform_2, window_bounds = array<i64: 8, 128>}]} {
    %c0 = arith.constant 0 : index
    %c0_0 = arith.constant 0 : index
    %0 = vector.load %arg1[%c0, %c0_0] : memref<8x4xi32, #tpu.memory_space<vmem>>, vector<8x4xi32>
    %c0_1 = arith.constant 0 : index
    %c0_2 = arith.constant 0 : index
    %1 = vector.load %arg2[%c0_1, %c0_2] : memref<64x32xf32, #tpu.memory_space<vmem>>, vector<64x32xf32>
    %2 = tpu.iota {dimensions = array<i32: 1>} : vector<8x64xi32>
    %3 = vector.extract_strided_slice %0 {offsets = [0, 0], sizes = [8, 1], strides = [1, 1]} : vector<8x4xi32> to vector<8x1xi32>
    %4 = vector.broadcast %3 : vector<8x1xi32> to vector<8x64xi32>
    %5 = arith.cmpi eq, %2, %4 : vector<8x64xi32>
    %6 = arith.extui %5 : vector<8x64xi1> to vector<8x64xi32>
    %7 = arith.sitofp %6 : vector<8x64xi32> to vector<8x64xf32>
    %cst = arith.constant dense<0.000000e+00> : vector<8x32xf32>
    %8 = tpu.matmul %7, %1, %cst {dimension_numbers = #tpu.dot_dimension_numbers<[1], [0], [0], [1], [0, 0, 1, 1], [], []>} : vector<8x64xf32>, vector<64x32xf32>, vector<8x32xf32> -> vector<8x32xf32>
    %9 = vector.extract_strided_slice %0 {offsets = [0, 1], sizes = [8, 1], strides = [1, 1]} : vector<8x4xi32> to vector<8x1xi32>
    %10 = vector.broadcast %9 : vector<8x1xi32> to vector<8x64xi32>
    %11 = arith.cmpi eq, %2, %10 : vector<8x64xi32>
    %12 = arith.extui %11 : vector<8x64xi1> to vector<8x64xi32>
    %13 = arith.sitofp %12 : vector<8x64xi32> to vector<8x64xf32>
    %cst_3 = arith.constant dense<0.000000e+00> : vector<8x32xf32>
    %14 = tpu.matmul %13, %1, %cst_3 {dimension_numbers = #tpu.dot_dimension_numbers<[1], [0], [0], [1], [0, 0, 1, 1], [], []>} : vector<8x64xf32>, vector<64x32xf32>, vector<8x32xf32> -> vector<8x32xf32>
    %15 = vector.extract_strided_slice %0 {offsets = [0, 2], sizes = [8, 1], strides = [1, 1]} : vector<8x4xi32> to vector<8x1xi32>
    %16 = vector.broadcast %15 : vector<8x1xi32> to vector<8x64xi32>
    %17 = arith.cmpi eq, %2, %16 : vector<8x64xi32>
    %18 = arith.extui %17 : vector<8x64xi1> to vector<8x64xi32>
    %19 = arith.sitofp %18 : vector<8x64xi32> to vector<8x64xf32>
    %cst_4 = arith.constant dense<0.000000e+00> : vector<8x32xf32>
    %20 = tpu.matmul %19, %1, %cst_4 {dimension_numbers = #tpu.dot_dimension_numbers<[1], [0], [0], [1], [0, 0, 1, 1], [], []>} : vector<8x64xf32>, vector<64x32xf32>, vector<8x32xf32> -> vector<8x32xf32>
    %21 = vector.extract_strided_slice %0 {offsets = [0, 3], sizes = [8, 1], strides = [1, 1]} : vector<8x4xi32> to vector<8x1xi32>
    %22 = vector.broadcast %21 : vector<8x1xi32> to vector<8x64xi32>
    %23 = arith.cmpi eq, %2, %22 : vector<8x64xi32>
    %24 = arith.extui %23 : vector<8x64xi1> to vector<8x64xi32>
    %25 = arith.sitofp %24 : vector<8x64xi32> to vector<8x64xf32>
    %cst_5 = arith.constant dense<0.000000e+00> : vector<8x32xf32>
    %26 = tpu.matmul %25, %1, %cst_5 {dimension_numbers = #tpu.dot_dimension_numbers<[1], [0], [0], [1], [0, 0, 1, 1], [], []>} : vector<8x64xf32>, vector<64x32xf32>, vector<8x32xf32> -> vector<8x32xf32>
    %27 = tpu.concatenate %8, %14, %20, %26 in 1 : vector<8x32xf32>, vector<8x32xf32>, vector<8x32xf32>, vector<8x32xf32> -> vector<8x128xf32>
    %c0_6 = arith.constant 0 : index
    %c0_7 = arith.constant 0 : index
    %28 = vector.load %arg3[%c0_6, %c0_7] : memref<8x128xf32, #tpu.memory_space<vmem>>, vector<8x128xf32>
    tpu.vector_store %arg3[%c0_6, %c0_7], %27 {strides = array<i32>} : memref<8x128xf32, #tpu.memory_space<vmem>>, vector<8x128xf32>,
    return
  }
  func.func @transform_0(%arg0: i32) -> (i32, i32) {
    %c0_i32 = arith.constant 0 : i32
    %c0_i32_0 = arith.constant 0 : i32
    return %arg0, %c0_i32 : i32, i32
  }
  func.func @transform_1(%arg0: i32) -> (i32, i32) {
    %c0_i32 = arith.constant 0 : i32
    %c0_i32_0 = arith.constant 0 : i32
    %c0_i32_1 = arith.constant 0 : i32
    return %c0_i32, %c0_i32_0 : i32, i32
  }
  func.func @transform_2(%arg0: i32) -> (i32, i32) {
    %c0_i32 = arith.constant 0 : i32
    %c0_i32_0 = arith.constant 0 : i32
    return %arg0, %c0_i32 : i32, i32
  }
}

</mosaic_0001>

<llo_original>
// kernel: tpu_custom_call.1
$region0: #{tpu_custom_call.1}
  #allocation0 [shape = 'u32[]', space=smem, size = 0x4, offset = 0x4, fixed_abs, tag = 'smem constant byte address 0x4 - core index']
  #allocation1 [shape = 'u32[144,128]{1,0:T(1,128)}', space=vmem, size = 0x12000, scoped, tag = 'internal scratch']
  %s0 = inlined_call_operand.vmem [shape: s32[8,4], index: 0, kind: input, shape index: {}]
  %s1 = inlined_call_operand.vmem [shape: f32[64,32], index: 1, kind: input, shape index: {}]
  %s2 = inlined_call_operand.hbm [shape: f32[8,128], index: 2, kind: output, shape index: {}]
  %s3 = sld [smem:[#allocation0]]
  $region18: #{tpu_custom_call.1} parent=0
    _
  %s5 = ssub.s32 1, %s3
  %s6 = scalar_select 0, %s5, %s3
  $region1: #{tpu_custom_call.1} parent=0
    #allocation2 [shape = 'u8[4096]{0}', space=vmem, size = 0x1000, scoped, tag = 'output window, operand 0, single buffered']
    #allocation3 [shape = 's32[1]{0}', space=sflag, size = 0x4, scoped, tag = 'scoped memory for tpu_custom_call.1']
    %7 = vsyncpa [#allocation3], 0
    // Predicated region
    $region2: #{tpu_custom_call.1} parent=1 // pred_check
      _
    $region3: #{tpu_custom_call.1} parent=1 // pred_check_branch
      %9 = sbr.rel (0) target = $region5
    $region4: #{tpu_custom_call.1} parent=1 // pred_region
      _
    $region5: #{tpu_custom_call.1} parent=1 // pred_fallthru
      _
    // Predicated region
    $region6: #{tpu_custom_call.1} parent=1 // pred_check
      _
    $region7: #{tpu_custom_call.1} parent=1 // pred_check_branch
      %11 = sbr.rel (0) target = $region9
    $region8: #{tpu_custom_call.1} parent=1 // pred_region
      _
    $region9: #{tpu_custom_call.1} parent=1 // pred_fallthru
      _
    %v12 = vld [vmem:[%s0] sm:$0xff]
    %v13 = vld [vmem:[%s1] sm:$0xff]
    %v14 = vld [vmem:[%s1 + $0x8] sm:$0xff]
    %v15 = vld [vmem:[%s1 + $0x10] sm:$0xff]
    %v16 = vld [vmem:[%s1 + $0x18] sm:$0xff]
    %v17 = vld [vmem:[%s1 + $0x20] sm:$0xff]
    %v18 = vld [vmem:[%s1 + $0x28] sm:$0xff]
    %v19 = vld [vmem:[%s1 + $0x30] sm:$0xff]
    %v20 = vld [vmem:[%s1 + $0x38] sm:$0xff]
    %v21 = vlaneseq
    %v22 = vand.u32 %v21, 127
    %23 = vset.pattern.permute.xlu0 0
    %24 = vperm.xlu0 %23, %v12
    %v25 = vpop.permute.xlu0 %24
    %vm26 = vcmp.eq.s32.totalorder %v22, %v25
    %v27 = vsel %vm26, 1, 0
    %v28 = vcvt.s32.f32 %v27
    %vm29 = vcmask 523264
    %v31 = vsel %vm29, %v28, 0
    %33 = vmatprep.subr.mxu0 0.0
    %34 = vmatpush1.msra.mxu0 %v13
    %35 = vmatprep.subr.mxu0 0.0
    %36 = vmatpush1.msra.mxu0 %v14
    %37 = vmatprep.subr.mxu0 0.0
    %38 = vmatpush1.msra.mxu0 %v15
    %39 = vmatprep.subr.mxu0 0.0
    %40 = vmatpush1.msra.mxu0 %v16
    %41 = vmatprep.subr.mxu0 0.0
    %42 = vmatpush1.msra.mxu0 %v17
    %43 = vmatprep.subr.mxu0 0.0
    %44 = vmatpush1.msra.mxu0 %v18
    %45 = vmatprep.subr.mxu0 0.0
    %46 = vmatpush1.msra.mxu0 %v19
    %47 = vmatprep.subr.mxu0 0.0
    %48 = vmatpush1.msra.mxu0 %v20
    %49 = vmatprep.subr.mxu0 0.0
    %50 = vmatpush1.msra.mxu0 0.0
    %51 = vmatprep.subr.mxu0 0.0
    %52 = vmatpush1.msra.mxu0 0.0
    %53 = vmatprep.subr.mxu0 0.0
    %54 = vmatpush1.msra.mxu0 0.0
    %55 = vmatprep.subr.mxu0 0.0
    %56 = vmatpush1.msra.mxu0 0.0
    %57 = vmatprep.subr.mxu0 0.0
    %58 = vmatpush1.msra.mxu0 0.0
    %59 = vmatprep.subr.mxu0 0.0
    %60 = vmatpush1.msra.mxu0 0.0
    %61 = vmatprep.subr.mxu0 0.0
    %62 = vmatpush1.msra.mxu0 0.0
    %63 = vmatprep.subr.mxu0 0.0
    %64 = vmatpush1.msra.mxu0 0.0
    %65 = vmatprep.subr.mxu0 0.0
    %66 = vmatpush1.msra.mxu0 0.0
    %67 = vmatprep.subr.mxu0 0.0
    %68 = vmatpush1.msra.mxu0 0.0
    %69 = vmatprep.subr.mxu0 0.0
    %70 = vmatpush1.msra.mxu0 0.0
    %71 = vmatprep.subr.mxu0 0.0
    %72 = vmatpush1.msra.mxu0 0.0
    %73 = vmatprep.subr.mxu0 0.0
    %74 = vmatpush1.msra.mxu0 0.0
    %75 = vmatprep.subr.mxu0 0.0
    %76 = vmatpush1.msra.mxu0 0.0
    %77 = vmatprep.subr.mxu0 0.0
    %78 = vmatpush1.msra.mxu0 0.0
    %79 = vmatprep.subr.mxu0 0.0
    %80 = vmatpush1.msra.mxu0 0.0
    %81 = vmatprep.subr.mxu0 0.0
    %82 = vmatpush1.msra.mxu0 0.0
    %83 = vmatprep.subr.mxu0 0.0
    %84 = vmatpush1.msra.mxu0 0.0
    %85 = vmatprep.subr.mxu0 0.0
    %86 = vmatpush1.msra.mxu0 0.0
    %87 = vmatprep.subr.mxu0 0.0
    %88 = vmatpush1.msra.mxu0 0.0
    %89 = vmatprep.subr.mxu0 0.0
    %90 = vmatpush1.msra.mxu0 0.0
    %91 = vmatprep.subr.mxu0 0.0
    %92 = vmatpush1.msra.mxu0 0.0
    %93 = vmatprep.subr.mxu0 0.0
    %94 = vmatpush1.msra.mxu0 0.0
    %95 = vmatprep.subr.mxu0 0.0
    %96 = vmatpush1.msra.mxu0 0.0
    %97 = vmatprep.mubr.f32.mxu0 0.0
    %98 = vmatmul.mubr.f32.gmra.mrb[0].mxu0 %v31
    %v99 = vpop.f32.mrb[0].mxu0
    %v100 = vadd.f32 0.0, %v99
    %v101 = vpop.f32.mrb[0].mxu0
    %102 = vdwg.mxu0
    %103 = vset.pattern.permute.xlu0 1
    %104 = vperm.xlu0 %103, %v12
    %v105 = vpop.permute.xlu0 %104
    %vm106 = vcmp.eq.s32.totalorder %v22, %v105
    %v107 = vsel %vm106, 1, 0
    %v108 = vcvt.s32.f32 %v107
    %v110 = vsel %vm29, %v108, 0
    %112 = vmatprep.subr.mxu0 0.0
    %113 = vmatpush1.msra.mxu0 %v13
    %114 = vmatprep.subr.mxu0 0.0
    %115 = vmatpush1.msra.mxu0 %v14
    %116 = vmatprep.subr.mxu0 0.0
    %117 = vmatpush1.msra.mxu0 %v15
    %118 = vmatprep.subr.mxu0 0.0
    %119 = vmatpush1.msra.mxu0 %v16
    %120 = vmatprep.subr.mxu0 0.0
    %121 = vmatpush1.msra.mxu0 %v17
    %122 = vmatprep.subr.mxu0 0.0
    %123 = vmatpush1.msra.mxu0 %v18
    %124 = vmatprep.subr.mxu0 0.0
    %125 = vmatpush1.msra.mxu0 %v19
    %126 = vmatprep.subr.mxu0 0.0
    %127 = vmatpush1.msra.mxu0 %v20
    %128 = vmatprep.subr.mxu0 0.0
    %129 = vmatpush1.msra.mxu0 0.0
    %130 = vmatprep.subr.mxu0 0.0
    %131 = vmatpush1.msra.mxu0 0.0
    %132 = vmatprep.subr.mxu0 0.0
    %133 = vmatpush1.msra.mxu0 0.0
    %134 = vmatprep.subr.mxu0 0.0
    %135 = vmatpush1.msra.mxu0 0.0
    %136 = vmatprep.subr.mxu0 0.0
    %137 = vmatpush1.msra.mxu0 0.0
    %138 = vmatprep.subr.mxu0 0.0
    %139 = vmatpush1.msra.mxu0 0.0
    %140 = vmatprep.subr.mxu0 0.0
    %141 = vmatpush1.msra.mxu0 0.0
    %142 = vmatprep.subr.mxu0 0.0
    %143 = vmatpush1.msra.mxu0 0.0
    %144 = vmatprep.subr.mxu0 0.0
    %145 = vmatpush1.msra.mxu0 0.0
    %146 = vmatprep.subr.mxu0 0.0
    %147 = vmatpush1.msra.mxu0 0.0
    %148 = vmatprep.subr.mxu0 0.0
    %149 = vmatpush1.msra.mxu0 0.0
    %150 = vmatprep.subr.mxu0 0.0
    %151 = vmatpush1.msra.mxu0 0.0
    %152 = vmatprep.subr.mxu0 0.0
    %153 = vmatpush1.msra.mxu0 0.0
    %154 = vmatprep.subr.mxu0 0.0
    %155 = vmatpush1.msra.mxu0 0.0
    %156 = vmatprep.subr.mxu0 0.0
    %157 = vmatpush1.msra.mxu0 0.0
    %158 = vmatprep.subr.mxu0 0.0
    %159 = vmatpush1.msra.mxu0 0.0
    %160 = vmatprep.subr.mxu0 0.0
    %161 = vmatpush1.msra.mxu0 0.0
    %162 = vmatprep.subr.mxu0 0.0
    %163 = vmatpush1.msra.mxu0 0.0
    %164 = vmatprep.subr.mxu0 0.0
    %165 = vmatpush1.msra.mxu0 0.0
    %166 = vmatprep.subr.mxu0 0.0
    %167 = vmatpush1.msra.mxu0 0.0
    %168 = vmatprep.subr.mxu0 0.0
    %169 = vmatpush1.msra.mxu0 0.0
    %170 = vmatprep.subr.mxu0 0.0
    %171 = vmatpush1.msra.mxu0 0.0
    %172 = vmatprep.subr.mxu0 0.0
    %173 = vmatpush1.msra.mxu0 0.0
    %174 = vmatprep.subr.mxu0 0.0
    %175 = vmatpush1.msra.mxu0 0.0
    %176 = vmatprep.mubr.f32.mxu0 0.0
    %177 = vmatmul.mubr.f32.gmra.mrb[0].mxu0 %v110
    %v178 = vpop.f32.mrb[0].mxu0
    %v179 = vadd.f32 0.0, %v178
    %v180 = vpop.f32.mrb[0].mxu0
    %181 = vdwg.mxu0
    %182 = vset.pattern.permute.xlu0 2
    %183 = vperm.xlu0 %182, %v12
    %v184 = vpop.permute.xlu0 %183
    %vm185 = vcmp.eq.s32.totalorder %v22, %v184
    %v186 = vsel %vm185, 1, 0
    %v187 = vcvt.s32.f32 %v186
    %v189 = vsel %vm29, %v187, 0
    %191 = vmatprep.subr.mxu0 0.0
    %192 = vmatpush1.msra.mxu0 %v13
    %193 = vmatprep.subr.mxu0 0.0
    %194 = vmatpush1.msra.mxu0 %v14
    %195 = vmatprep.subr.mxu0 0.0
    %196 = vmatpush1.msra.mxu0 %v15
    %197 = vmatprep.subr.mxu0 0.0
    %198 = vmatpush1.msra.mxu0 %v16
    %199 = vmatprep.subr.mxu0 0.0
    %200 = vmatpush1.msra.mxu0 %v17
    %201 = vmatprep.subr.mxu0 0.0
    %202 = vmatpush1.msra.mxu0 %v18
    %203 = vmatprep.subr.mxu0 0.0
    %204 = vmatpush1.msra.mxu0 %v19
    %205 = vmatprep.subr.mxu0 0.0
    %206 = vmatpush1.msra.mxu0 %v20
    %207 = vmatprep.subr.mxu0 0.0
    %208 = vmatpush1.msra.mxu0 0.0
    %209 = vmatprep.subr.mxu0 0.0
    %210 = vmatpush1.msra.mxu0 0.0
    %211 = vmatprep.subr.mxu0 0.0
    %212 = vmatpush1.msra.mxu0 0.0
    %213 = vmatprep.subr.mxu0 0.0
    %214 = vmatpush1.msra.mxu0 0.0
    %215 = vmatprep.subr.mxu0 0.0
    %216 = vmatpush1.msra.mxu0 0.0
    %217 = vmatprep.subr.mxu0 0.0
    %218 = vmatpush1.msra.mxu0 0.0
    %219 = vmatprep.subr.mxu0 0.0
    %220 = vmatpush1.msra.mxu0 0.0
    %221 = vmatprep.subr.mxu0 0.0
    %222 = vmatpush1.msra.mxu0 0.0
    %223 = vmatprep.subr.mxu0 0.0
    %224 = vmatpush1.msra.mxu0 0.0
    %225 = vmatprep.subr.mxu0 0.0
    %226 = vmatpush1.msra.mxu0 0.0
    %227 = vmatprep.subr.mxu0 0.0
    %228 = vmatpush1.msra.mxu0 0.0
    %229 = vmatprep.subr.mxu0 0.0
    %230 = vmatpush1.msra.mxu0 0.0
    %231 = vmatprep.subr.mxu0 0.0
    %232 = vmatpush1.msra.mxu0 0.0
    %233 = vmatprep.subr.mxu0 0.0
    %234 = vmatpush1.msra.mxu0 0.0
    %235 = vmatprep.subr.mxu0 0.0
    %236 = vmatpush1.msra.mxu0 0.0
    %237 = vmatprep.subr.mxu0 0.0
    %238 = vmatpush1.msra.mxu0 0.0
    %239 = vmatprep.subr.mxu0 0.0
    %240 = vmatpush1.msra.mxu0 0.0
    %241 = vmatprep.subr.mxu0 0.0
    %242 = vmatpush1.msra.mxu0 0.0
    %243 = vmatprep.subr.mxu0 0.0
    %244 = vmatpush1.msra.mxu0 0.0
    %245 = vmatprep.subr.mxu0 0.0
    %246 = vmatpush1.msra.mxu0 0.0
    %247 = vmatprep.subr.mxu0 0.0
    %248 = vmatpush1.msra.mxu0 0.0
    %249 = vmatprep.subr.mxu0 0.0
    %250 = vmatpush1.msra.mxu0 0.0
    %251 = vmatprep.subr.mxu0 0.0
    %252 = vmatpush1.msra.mxu0 0.0
    %253 = vmatprep.subr.mxu0 0.0
    %254 = vmatpush1.msra.mxu0 0.0
    %255 = vmatprep.mubr.f32.mxu0 0.0
    %256 = vmatmul.mubr.f32.gmra.mrb[0].mxu0 %v189
    %v257 = vpop.f32.mrb[0].mxu0
    %v258 = vadd.f32 0.0, %v257
    %v259 = vpop.f32.mrb[0].mxu0
    %260 = vdwg.mxu0
    %261 = vset.pattern.permute.xlu0 3
    %262 = vperm.xlu0 %261, %v12
    %v263 = vpop.permute.xlu0 %262
    %vm264 = vcmp.eq.s32.totalorder %v22, %v263
    %v265 = vsel %vm264, 1, 0
    %v266 = vcvt.s32.f32 %v265
    %v268 = vsel %vm29, %v266, 0
    %270 = vmatprep.subr.mxu0 0.0
    %271 = vmatpush1.msra.mxu0 %v13
    %272 = vmatprep.subr.mxu0 0.0
    %273 = vmatpush1.msra.mxu0 %v14
    %274 = vmatprep.subr.mxu0 0.0
    %275 = vmatpush1.msra.mxu0 %v15
    %276 = vmatprep.subr.mxu0 0.0
    %277 = vmatpush1.msra.mxu0 %v16
    %278 = vmatprep.subr.mxu0 0.0
    %279 = vmatpush1.msra.mxu0 %v17
    %280 = vmatprep.subr.mxu0 0.0
    %281 = vmatpush1.msra.mxu0 %v18
    %282 = vmatprep.subr.mxu0 0.0
    %283 = vmatpush1.msra.mxu0 %v19
    %284 = vmatprep.subr.mxu0 0.0
    %285 = vmatpush1.msra.mxu0 %v20
    %286 = vmatprep.subr.mxu0 0.0
    %287 = vmatpush1.msra.mxu0 0.0
    %288 = vmatprep.subr.mxu0 0.0
    %289 = vmatpush1.msra.mxu0 0.0
    %290 = vmatprep.subr.mxu0 0.0
    %291 = vmatpush1.msra.mxu0 0.0
    %292 = vmatprep.subr.mxu0 0.0
    %293 = vmatpush1.msra.mxu0 0.0
    %294 = vmatprep.subr.mxu0 0.0
    %295 = vmatpush1.msra.mxu0 0.0
    %296 = vmatprep.subr.mxu0 0.0
    %297 = vmatpush1.msra.mxu0 0.0
    %298 = vmatprep.subr.mxu0 0.0
    %299 = vmatpush1.msra.mxu0 0.0
    %300 = vmatprep.subr.mxu0 0.0
    %301 = vmatpush1.msra.mxu0 0.0
    %302 = vmatprep.subr.mxu0 0.0
    %303 = vmatpush1.msra.mxu0 0.0
    %304 = vmatprep.subr.mxu0 0.0
    %305 = vmatpush1.msra.mxu0 0.0
    %306 = vmatprep.subr.mxu0 0.0
    %307 = vmatpush1.msra.mxu0 0.0
    %308 = vmatprep.subr.mxu0 0.0
    %309 = vmatpush1.msra.mxu0 0.0
    %310 = vmatprep.subr.mxu0 0.0
    %311 = vmatpush1.msra.mxu0 0.0
    %312 = vmatprep.subr.mxu0 0.0
    %313 = vmatpush1.msra.mxu0 0.0
    %314 = vmatprep.subr.mxu0 0.0
    %315 = vmatpush1.msra.mxu0 0.0
    %316 = vmatprep.subr.mxu0 0.0
    %317 = vmatpush1.msra.mxu0 0.0
    %318 = vmatprep.subr.mxu0 0.0
    %319 = vmatpush1.msra.mxu0 0.0
    %320 = vmatprep.subr.mxu0 0.0
    %321 = vmatpush1.msra.mxu0 0.0
    %322 = vmatprep.subr.mxu0 0.0
    %323 = vmatpush1.msra.mxu0 0.0
    %324 = vmatprep.subr.mxu0 0.0
    %325 = vmatpush1.msra.mxu0 0.0
    %326 = vmatprep.subr.mxu0 0.0
    %327 = vmatpush1.msra.mxu0 0.0
    %328 = vmatprep.subr.mxu0 0.0
    %329 = vmatpush1.msra.mxu0 0.0
    %330 = vmatprep.subr.mxu0 0.0
    %331 = vmatpush1.msra.mxu0 0.0
    %332 = vmatprep.subr.mxu0 0.0
    %333 = vmatpush1.msra.mxu0 0.0
    %334 = vmatprep.mubr.f32.mxu0 0.0
    %335 = vmatmul.mubr.f32.gmra.mrb[0].mxu0 %v268
    %v336 = vpop.f32.mrb[0].mxu0
    %v337 = vadd.f32 0.0, %v336
    %v338 = vpop.f32.mrb[0].mxu0
    %339 = vdwg.mxu0
    %341 = vrot.lane.b32.xlu0 %v179, 32
    %v342 = vpop.permute.xlu0 %341
    %345 = vrot.lane.b32.xlu0 %v258, 64
    %v346 = vpop.permute.xlu0 %345
    %349 = vrot.lane.b32.xlu0 %v337, 96
    %v350 = vpop.permute.xlu0 %349
    %vm352 = vcmask 261120
    %v353 = vsel %vm352, %v100, %v342
    %v354 = vsel %vm29, %v353, %v346
    %vm355 = vcmask 785408
    %v356 = vsel %vm355, %v354, %v350
    %357 = vst [vmem:[#allocation2] sm:$0xff] %v356
    // Predicated region
    $region10: #{tpu_custom_call.1} parent=1 // pred_check
      _
    $region11: #{tpu_custom_call.1} parent=1 // pred_check_branch
      %359 = sbr.rel (0) target = $region13
    $region12: #{tpu_custom_call.1} parent=1 // pred_region
      %s361 = ssub.s32 128, 128
      %362 = vsyncadd [#allocation3], %s361
      %s364 = sshll.u32 [#allocation2], 4
      %s365 = int_to_ptr.vmem [resolvable:$true] %s364
      %367 = dma.vmem_to_hbm [thread:$0]  %s365, 128, %s2, [#allocation3]
    $region13: #{tpu_custom_call.1} parent=1 // pred_fallthru
      _
    // Predicated region
    $region14: #{tpu_custom_call.1} parent=1 // pred_check
      _
    $region15: #{tpu_custom_call.1} parent=1 // pred_check_branch
      %369 = sbr.rel (0) target = $region17
    $region16: #{tpu_custom_call.1} parent=1 // pred_region
      %370 = dma.done [#allocation3], 128
    $region17: #{tpu_custom_call.1} parent=1 // pred_fallthru
      _
    %371 = vsyncpa [#allocation3], 1

</llo_original>
